<compile_context>
chip_gen: v5e
topology: v5e:2x2
jax: 0.10.0
libtpu: 0.0.40
codegen_flags: <defaults>
</compile_context>

<pallas_src>
import jax
import jax.numpy as jnp
from jax import lax
from jax.experimental import pallas as pl
from jax.experimental.pallas import tpu as pltpu


def _round_up(x, m):
    return (x + m - 1) // m * m


def lookup_embedding(x, uid_table, iid_table, *, block_rows=1024):
    """x: (B, 2) int32; uid_table: (U, D); iid_table: (I+1, D) -> (B, 2, D)."""
    B = x.shape[0]
    U, D = uid_table.shape
    I1, D2 = iid_table.shape
    assert D == D2, "embedding dims must match"

    out_dtype = jnp.result_type(uid_table.dtype, iid_table.dtype)
    n_rows = U + I1

    # One-hot-on-MXU gather is only sensible for genuinely small tables:
    # per-block cost is O(BLK * n_rows) compares + a K=n_rows matmul.
    assert n_rows <= 2048, (
        "tables too large for the one-hot VMEM-resident design; "
        "use a DMA row-gather instead")
    # TODO(synk): for larger tables, switch to PrefetchScalarGridSpec (ids in
    # SMEM) + memory_space=pl.ANY tables with manual make_async_copy row gather
    # into a (BLK, D) scratch instead of the one-hot matmul.

    # Block-diagonal fused table: row r (< U)  -> [uid_table[r] | 0     ]
    #                             row U + r    -> [0            | iid[r]]
    fused = jnp.zeros((n_rows, 2 * D), out_dtype)
    fused = fused.at[:U, :D].set(uid_table.astype(out_dtype))
    fused = fused.at[U:, D:].set(iid_table.astype(out_dtype))

    # ---- batch-block sizing ------------------------------------------------
    itemsize = jnp.dtype(out_dtype).itemsize
    lanes_out = _round_up(2 * D, 128)      # lane-padded output width
    rows_pad = _round_up(n_rows, 128)      # lane-padded one-hot width

    # Cap blk so the (blk, n_rows) one-hot intermediate and the (blk, 2D)
    # output block each stay around <= 2 MiB of VMEM.
    blk_cap_oh = max(8, (2 << 20) // (rows_pad * 4) // 8 * 8)
    blk_cap_out = max(8, (2 << 20) // (lanes_out * itemsize) // 8 * 8)
    # Aim for >= 2 grid steps when B allows it (v7x megacore sharding).
    blk_half = max(8, _round_up(-(-B // 2), 8))
    blk = min(block_rows, blk_cap_oh, blk_cap_out, blk_half)

    b_pad = _round_up(B, blk)
    if b_pad != B:
        x = jnp.pad(x, ((0, b_pad - B), (0, 0)))   # pad with id 0 (valid row)

    # ---- VMEM accounting (tile padding + buffer counts) --------------------
    vmem_est = (
        _round_up(n_rows, 8) * lanes_out * itemsize   # fused table, Buffered(1)
        + 2 * blk * 128 * 4                           # ids block, double-buffered
        + 2 * blk * lanes_out * itemsize              # out block, double-buffered
        + 3 * blk * rows_pad * 4                      # one-hot + compare temps
    )
    assert vmem_est <= 14 * 1024 * 1024, (
        "VMEM estimate too large; shrink block_rows or use the DMA-gather path")
    vmem_limit = int(vmem_est) + (4 << 20)            # headroom, fits v5e/v6e/v7x

    # ---- kernel -------------------------------------------------------------
    def kernel(x_ref, tbl_ref, out_ref):
        ids = x_ref[...]                                   # (BLK, 2) int32
        nblk = ids.shape[0]
        col = lax.broadcasted_iota(jnp.int32, (nblk, n_rows), 1)
        # Column c < U matches the user id, column c >= U matches iid + U.
        # Out-of-range / negative ids match no column -> all-zero row
        # (torch nn.Embedding would raise; documented divergence).
        sel = jnp.where(col < U, ids[:, 0:1], ids[:, 1:2] + U)
        oh = (col == sel).astype(tbl_ref.dtype)            # (BLK, U+I1)
        # Single fused MXU matmul writes the [uid_emb | iid_emb] slab directly.
        out_ref[...] = jnp.dot(
            oh, tbl_ref[...], preferred_element_type=jnp.float32
        ).astype(out_ref.dtype)

    out_flat = pl.pallas_call(
        kernel,
        out_shape=jax.ShapeDtypeStruct((b_pad, 2 * D), out_dtype),
        grid=(b_pad // blk,),
        in_specs=[
            pl.BlockSpec((blk, 2), lambda i: (i, 0)),          # ids for this block
            pl.BlockSpec((n_rows, 2 * D), lambda i: (0, 0),     # resident fused table
                         pipeline_mode=pl.Buffered(1)),         # single buffer
        ],
        out_specs=pl.BlockSpec((blk, 2 * D), lambda i: (i, 0)),
        compiler_params=pltpu.CompilerParams(
            dimension_semantics=("parallel",),                  # batch blocks independent
            vmem_limit_bytes=vmem_limit,
        ),
    )(x.astype(jnp.int32), fused)

    # (B, 2*D) -> (B, 2, D) is a row-major-compatible (free) reshape.
    return out_flat[:B].reshape(B, 2, D)


if __name__ == "__main__":
    # Small, deterministic setup consistent with the module's __init__.
    uid_all, iid_all, emb_dim = 16, 24, 32
    batch = 8

    key = jax.random.PRNGKey(0)
    k_uid, k_iid, k_u, k_i = jax.random.split(key, 4)

    # nn.Embedding(uid_all, emb_dim) and nn.Embedding(iid_all + 1, emb_dim)
    uid_table = jax.random.normal(k_uid, (uid_all, emb_dim), dtype=jnp.float32)
    iid_table = jax.random.normal(k_iid, (iid_all + 1, emb_dim), dtype=jnp.float32)

    uids = jax.random.randint(k_u, (batch,), 0, uid_all, dtype=jnp.int32)
    iids = jax.random.randint(k_i, (batch,), 0, iid_all + 1, dtype=jnp.int32)
    x = jnp.stack([uids, iids], axis=1)  # (B, 2) int32

    out = lookup_embedding(x, uid_table, iid_table)
    out = jax.block_until_ready(out)

    # Pure-JAX reference of the torch forward.
    ref = jnp.concatenate(
        [uid_table[x[:, 0]][:, None, :], iid_table[x[:, 1]][:, None, :]], axis=1
    )

    assert out.shape == (batch, 2, emb_dim)
    assert jnp.allclose(out, ref), "mismatch vs reference gather"
    print("KERNEL_OK")
</pallas_src>

<mosaic_0001>
module attributes {stable_mosaic.version = 11 : i64} {
  func.func @kernel(%arg0: i32, %arg1: memref<8x2xi32, #tpu.memory_space<vmem>>, %arg2: memref<41x64xf32, #tpu.memory_space<vmem>>, %arg3: memref<8x64xf32, #tpu.memory_space<vmem>>) attributes {dimension_semantics = [#tpu.dimension_semantics<parallel>], iteration_bounds = array<i64: 1>, scalar_prefetch = 0 : i64, scratch_operands = 0 : i64, tpu.core_type = #tpu.core_type<tc>, window_params = [{transform_indices = @transform_0, window_bounds = array<i64: 8, 2>}, {pipeline_mode = #tpu.pipeline_mode<synchronous>, transform_indices = @transform_1, window_bounds = array<i64: 41, 64>}, {transform_indices = @transform_2, window_bounds = array<i64: 8, 64>}]} {
    %c0 = arith.constant 0 : index
    %c0_0 = arith.constant 0 : index
    %0 = vector.load %arg1[%c0, %c0_0] : memref<8x2xi32, #tpu.memory_space<vmem>>, vector<8x2xi32>
    %1 = tpu.iota {dimensions = array<i32: 1>} : vector<8x41xi32>
    %c16_i32 = arith.constant 16 : i32
    %2 = vector.broadcast %c16_i32 : i32 to vector<8x41xi32>
    %3 = arith.cmpi slt, %1, %2 : vector<8x41xi32>
    %4 = vector.extract_strided_slice %0 {offsets = [0, 0], sizes = [8, 1], strides = [1, 1]} : vector<8x2xi32> to vector<8x1xi32>
    %5 = vector.extract_strided_slice %0 {offsets = [0, 1], sizes = [8, 1], strides = [1, 1]} : vector<8x2xi32> to vector<8x1xi32>
    %c16_i32_1 = arith.constant 16 : i32
    %6 = vector.broadcast %c16_i32_1 : i32 to vector<8x1xi32>
    %7 = arith.addi %5, %6 : vector<8x1xi32>
    %8 = vector.shape_cast %4 : vector<8x1xi32> to vector<8x1xi32>
    %9 = vector.broadcast %8 : vector<8x1xi32> to vector<8x41xi32>
    %10 = vector.shape_cast %7 : vector<8x1xi32> to vector<8x1xi32>
    %11 = vector.broadcast %10 : vector<8x1xi32> to vector<8x41xi32>
    %12 = arith.select %3, %9, %11 : vector<8x41xi1>, vector<8x41xi32>
    %13 = arith.cmpi eq, %1, %12 : vector<8x41xi32>
    %14 = arith.extui %13 : vector<8x41xi1> to vector<8x41xi32>
    %15 = arith.sitofp %14 : vector<8x41xi32> to vector<8x41xf32>
    %c0_2 = arith.constant 0 : index
    %c0_3 = arith.constant 0 : index
    %16 = vector.load %arg2[%c0_2, %c0_3] : memref<41x64xf32, #tpu.memory_space<vmem>>, vector<41x64xf32>
    %cst = arith.constant dense<0.000000e+00> : vector<8x64xf32>
    %17 = tpu.matmul %15, %16, %cst {dimension_numbers = #tpu.dot_dimension_numbers<[1], [0], [0], [1], [0, 0, 1, 1], [], []>} : vector<8x41xf32>, vector<41x64xf32>, vector<8x64xf32> -> vector<8x64xf32>
    %c0_4 = arith.constant 0 : index
    %c0_5 = arith.constant 0 : index
    %18 = vector.load %arg3[%c0_4, %c0_5] : memref<8x64xf32, #tpu.memory_space<vmem>>, vector<8x64xf32>
    tpu.vector_store %arg3[%c0_4, %c0_5], %17 {strides = array<i32>} : memref<8x64xf32, #tpu.memory_space<vmem>>, vector<8x64xf32>,
    return
  }
  func.func @transform_0(%arg0: i32) -> (i32, i32) {
    %c0_i32 = arith.constant 0 : i32
    %c0_i32_0 = arith.constant 0 : i32
    return %arg0, %c0_i32 : i32, i32
  }
  func.func @transform_1(%arg0: i32) -> (i32, i32) {
    %c0_i32 = arith.constant 0 : i32
    %c0_i32_0 = arith.constant 0 : i32
    %c0_i32_1 = arith.constant 0 : i32
    return %c0_i32, %c0_i32_0 : i32, i32
  }
  func.func @transform_2(%arg0: i32) -> (i32, i32) {
    %c0_i32 = arith.constant 0 : i32
    %c0_i32_0 = arith.constant 0 : i32
    return %arg0, %c0_i32 : i32, i32
  }
}

</mosaic_0001>

<llo_original>
// kernel: tpu_custom_call.1
$region0: #{tpu_custom_call.1}
  #allocation0 [shape = 'u32[]', space=smem, size = 0x4, offset = 0x4, fixed_abs, tag = 'smem constant byte address 0x4 - core index']
  #allocation1 [shape = 'u32[72,128]{1,0:T(1,128)}', space=vmem, size = 0x9000, scoped, tag = 'internal scratch']
  %s0 = inlined_call_operand.vmem [shape: s32[8,2], index: 0, kind: input, shape index: {}]
  %s1 = inlined_call_operand.hbm [shape: f32[41,64], index: 1, kind: input, shape index: {}]
  %s2 = inlined_call_operand.hbm [shape: f32[8,64], index: 2, kind: output, shape index: {}]
  %s3 = sld [smem:[#allocation0]]
  $region22: #{tpu_custom_call.1} parent=0
    _
  %s5 = ssub.s32 1, %s3
  %s6 = scalar_select 0, %s5, %s3
  $region1: #{tpu_custom_call.1} parent=0
    #allocation2 [shape = 'u8[24576]{0}', space=vmem, size = 0x6000, scoped, tag = 'input window, operand 1, single buffered']
    #allocation3 [shape = 's32[1]{0}', space=sflag, size = 0x4, scoped, tag = 'scoped memory for tpu_custom_call.1']
    #allocation4 [shape = 's32[1]{0}', space=sflag, size = 0x4, scoped, tag = 'scoped memory for tpu_custom_call.1']
    #allocation5 [shape = 'u8[4096]{0}', space=vmem, size = 0x1000, scoped, tag = 'output window, operand 0, single buffered']
    %7 = vsyncpa [#allocation3], 0
    %8 = vsyncpa [#allocation4], 0
    // Predicated region
    $region2: #{tpu_custom_call.1} parent=1 // pred_check
      _
    $region3: #{tpu_custom_call.1} parent=1 // pred_check_branch
      %10 = sbr.rel (0) target = $region5
    $region4: #{tpu_custom_call.1} parent=1 // pred_region
      _
    $region5: #{tpu_custom_call.1} parent=1 // pred_fallthru
      _
    // Predicated region
    $region6: #{tpu_custom_call.1} parent=1 // pred_check
      _
    $region7: #{tpu_custom_call.1} parent=1 // pred_check_branch
      %12 = sbr.rel (0) target = $region9
    $region8: #{tpu_custom_call.1} parent=1 // pred_region
      %14 = vsyncadd [#allocation3], 0
      %s15 = sshll.u32 %s1, 4
      %s16 = int_to_ptr.hbm [resolvable:$true] %s15
      %s17 = sshll.u32 [#allocation2], 4
      %s18 = int_to_ptr.vmem [resolvable:$true] %s17
      %23 = dma.hbm_to_vmem [thread:$0]  %s16, 768, %s18, [#allocation3], 128, 128, 8
    $region9: #{tpu_custom_call.1} parent=1 // pred_fallthru
      _
    // Predicated region
    $region10: #{tpu_custom_call.1} parent=1 // pred_check
      _
    $region11: #{tpu_custom_call.1} parent=1 // pred_check_branch
      %25 = sbr.rel (0) target = $region13
    $region12: #{tpu_custom_call.1} parent=1 // pred_region
      %27 = dma.done [#allocation3], 768
    $region13: #{tpu_custom_call.1} parent=1 // pred_fallthru
      _
    %v28 = vld [vmem:[%s0] sm:$0xff]
    %v29 = vlaneseq
    %v30 = vand.u32 %v29, 127
    %vm31 = vcmp.lt.s32.totalorder %v30, 16
    %v32 = vadd.s32 %v28, 16
    %33 = vset.pattern.permute.xlu0 0
    %34 = vperm.xlu0 %33, %v28
    %v35 = vpop.permute.xlu0 %34
    %36 = vset.pattern.permute.xlu0 1
    %37 = vperm.xlu0 %36, %v32
    %v38 = vpop.permute.xlu0 %37
    %v39 = vsel %vm31, %v35, %v38
    %vm40 = vcmp.eq.s32.totalorder %v30, %v39
    %v41 = vsel %vm40, 1, 0
    %v42 = vcvt.s32.f32 %v41
    %v43 = vld [vmem:[#allocation2] sm:$0xff]
    %v44 = vld [vmem:[#allocation2 + $0x8] sm:$0xff]
    %v45 = vld [vmem:[#allocation2 + $0x10] sm:$0xff]
    %v46 = vld [vmem:[#allocation2 + $0x18] sm:$0xff]
    %v47 = vld [vmem:[#allocation2 + $0x20] sm:$0xff]
    %v48 = vld [vmem:[#allocation2 + $0x28] sm:$0x1]
    %vm49 = vcmask 334848
    %v51 = vsel %vm49, %v42, 0
    %vm53 = vcmask 1040384
    %v55 = vsel %vm53, %v48, 0
    %57 = vmatpush.msra.mxu0 0.0
    %58 = vmatpush.msra.mxu0 0.0
    %59 = vmatpush.msra.mxu0 0.0
    %60 = vmatpush.msra.mxu0 0.0
    %61 = vmatpush.msra.mxu0 0.0
    %62 = vmatpush.msra.mxu0 0.0
    %63 = vmatpush.msra.mxu0 0.0
    %64 = vmatpush.msra.mxu0 0.0
    %65 = vmatpush.msra.mxu0 0.0
    %66 = vmatpush.msra.mxu0 0.0
    %67 = vmatpush.msra.mxu0 %v55
    %68 = vmatpush.msra.mxu0 %v47
    %69 = vmatpush.msra.mxu0 %v46
    %70 = vmatpush.msra.mxu0 %v45
    %71 = vmatpush.msra.mxu0 %v44
    %72 = vmatpush.msra.mxu0 %v43
    %73 = vmatmul.f32.gmra.mxu0 %v51
    %v74 = vpop.f32.mrf.mxu0
    %v75 = vadd.f32 0.0, %v74
    %76 = vdwg.mxu0
    %vm77 = vcmask 523264
    %78 = vst.msk [vmem:[#allocation5] sm:$0xff] %vm77, %v75
    // Predicated region
    $region14: #{tpu_custom_call.1} parent=1 // pred_check
      _
    $region15: #{tpu_custom_call.1} parent=1 // pred_check_branch
      %80 = sbr.rel (0) target = $region17
    $region16: #{tpu_custom_call.1} parent=1 // pred_region
      %82 = vsyncadd [#allocation4], 0
      %s84 = sshll.u32 [#allocation5], 4
      %s85 = int_to_ptr.vmem [resolvable:$true] %s84
      %s86 = sshll.u32 %s2, 4
      %s87 = int_to_ptr.hbm [resolvable:$true] %s86
      %89 = dma.vmem_to_hbm [thread:$0]  %s85, 128, %s87, [#allocation4]
    $region17: #{tpu_custom_call.1} parent=1 // pred_fallthru
      _
    // Predicated region
    $region18: #{tpu_custom_call.1} parent=1 // pred_check
      _
    $region19: #{tpu_custom_call.1} parent=1 // pred_check_branch
      %91 = sbr.rel (0) target = $region21
    $region20: #{tpu_custom_call.1} parent=1 // pred_region
      %93 = dma.done [#allocation4], 128
    $region21: #{tpu_custom_call.1} parent=1 // pred_fallthru
      _
    %94 = vsyncpa [#allocation3], 1
    %95 = vsyncpa [#allocation4], 1

</llo_original>
